<compile_context>
chip_gen: v7x
topology: tpu7x:2x2x1
jax: 0.10.0
libtpu: 0.0.40
codegen_flags: <defaults>
</compile_context>

<pallas_src>
import functools

import jax
import jax.numpy as jnp
from jax.experimental import pallas as pl
from jax.experimental.pallas import tpu as pltpu


OUT_PAD = 128           # lane-dense output slab width: [mean | value | pad]
MAX_BATCH_TILE = 1024   # rows per grid step (keeps v7x's 64 MiB/TC VMEM budget safe)


# ---------------------------------------------------------------------------
# Pallas kernel: 4 dependent bf16 MXU matmuls + f32 VPU bias/ReLU, ending in a
# single lane-dense (TB, OUT_PAD) store.
# ---------------------------------------------------------------------------
def actor_critic_kernel(
    x_ref,
    w1_ref, b1_ref,          # state -> hidden (hidden padded to Hp lanes)
    w2_ref, b2_ref,          # hidden -> hidden
    wac_ref, bac_ref,        # fused [actor_fc | critic_fc]  (Hp -> 2*Hp)
    whead_ref, bhead_ref,    # fused block-diag [actor_mean ; critic_value] -> OUT_PAD
    out_ref,                 # (TB, OUT_PAD) slab: [mean | value | 0]
):
    wdt = w1_ref.dtype       # bf16 weights (MXU-native); elementwise work stays f32

    x = x_ref[...].astype(wdt)
    h1 = jnp.maximum(
        jnp.dot(x, w1_ref[...], preferred_element_type=jnp.float32) + b1_ref[...], 0.0)
    h2 = jnp.maximum(
        jnp.dot(h1.astype(wdt), w2_ref[...], preferred_element_type=jnp.float32)
        + b2_ref[...], 0.0)
    # fused actor/critic feature layer: [actor_features | critic_features]
    hf = jnp.maximum(
        jnp.dot(h2.astype(wdt), wac_ref[...], preferred_element_type=jnp.float32)
        + bac_ref[...], 0.0)
    # fused block-diagonal head -> [mean | value | 0], bias already holds [bm | bv | 0]
    head = jnp.dot(hf.astype(wdt), whead_ref[...], preferred_element_type=jnp.float32)
    out_ref[...] = head + bhead_ref[...]


# ---------------------------------------------------------------------------
# Tiling / VMEM helpers
# ---------------------------------------------------------------------------
def _batch_tile(batch):
    # Aim for >=2 grid steps whenever tiles can stay 8-row aligned (so v7x's second
    # TensorCore gets work via the "parallel" axis); cap tiles at 1024 rows so
    # double-buffered activations fit v7x's 64 MiB/TC VMEM.
    if batch < 16:
        return batch
    tile = ((-(-batch // 2) + 7) // 8) * 8
    return min(MAX_BATCH_TILE, tile)


def _vmem_limit_bytes(TB, state_dim, fused):
    kernel_inputs = ("w1", "b1", "w2", "b2", "w_ac", "b_ac", "w_head", "b_head")
    weight_bytes = sum(int(fused[k].size) * fused[k].dtype.itemsize for k in kernel_inputs)
    Hp = fused["w2"].shape[0]
    stream = 2 * TB * (state_dim + OUT_PAD) * 4       # double-buffered x / out tiles (f32)
    live = 2 * TB * (4 * Hp + OUT_PAD) * 4            # f32 intermediates, 2x margin
    need = 2 * weight_bytes + stream + live + (8 << 20)
    # >=32 MiB (raises v5e's 16 MiB default), <=64 MiB (physical VMEM per v7x core).
    return int(min(max(need, 32 << 20), 64 << 20))


# ---------------------------------------------------------------------------
# Wrapper: batch-tiled grid, weights VMEM-resident across grid steps.
# ---------------------------------------------------------------------------
@functools.partial(jax.jit, static_argnames=("action_dim",))
def actor_critic_forward(state, fused, action_dim):
    B, state_dim = state.shape
    TB = _batch_tile(B)
    nb = pl.cdiv(B, TB)

    batch_block = lambda i: (i, 0)   # streamed over the batch grid
    resident = lambda i: (0, 0)      # weights stay in VMEM across all grid steps

    # TODO(synk): for hidden_dim >~ 2048 (bf16) add a K-tiled "arbitrary" grid axis for
    # w2 / w_ac (with an f32 accumulator scratch) instead of keeping them fully
    # VMEM-resident -- v7x only has 64 MiB VMEM per TensorCore.
    in_arrays = (
        state,
        fused["w1"], fused["b1"],
        fused["w2"], fused["b2"],
        fused["w_ac"], fused["b_ac"],
        fused["w_head"], fused["b_head"],
    )
    in_specs = [pl.BlockSpec((TB, state_dim), batch_block)] + [
        pl.BlockSpec(a.shape, resident) for a in in_arrays[1:]
    ]

    slab = pl.pallas_call(
        actor_critic_kernel,
        out_shape=jax.ShapeDtypeStruct((B, OUT_PAD), jnp.float32),
        grid=(nb,),
        in_specs=in_specs,
        out_specs=pl.BlockSpec((TB, OUT_PAD), batch_block),
        compiler_params=pltpu.CompilerParams(
            dimension_semantics=("parallel",),   # v7x: batch split across both TCs
            vmem_limit_bytes=_vmem_limit_bytes(TB, state_dim, fused),
        ),
    )(*in_arrays)

    A = action_dim
    action_mean = slab[:, :A]
    value = slab[:, A:A + 1]
    # std = exp(log_std) is batch-invariant: precomputed at fuse time, broadcast here.
    action_std = jnp.broadcast_to(fused["std_row"], (B, A))
    return action_mean, action_std, value


# ---------------------------------------------------------------------------
# One-time parameter fusion (outside the hot path).
# ---------------------------------------------------------------------------
def fuse_params(p, weight_dtype=jnp.bfloat16):
    A = p["wm"].shape[1]           # action_dim
    H = p["wa"].shape[0]           # hidden_dim
    S = p["w1"].shape[0]           # state_dim
    assert A + 1 <= OUT_PAD, "action_dim too large for the 128-lane output slab"

    Hp = max(128, ((H + 127) // 128) * 128)   # lane-dense hidden width

    def pad2(w, r, c):
        return jnp.zeros((r, c), jnp.float32).at[: w.shape[0], : w.shape[1]].set(w)

    w1 = pad2(p["w1"], S, Hp)
    b1 = pad2(p["b1"], 1, Hp)
    w2 = pad2(p["w2"], Hp, Hp)
    b2 = pad2(p["b2"], 1, Hp)

    # [actor_fc | critic_fc] in one (Hp, 2*Hp) matmul (2*Hp is a multiple of 256)
    w_ac = jnp.concatenate([pad2(p["wa"], Hp, Hp), pad2(p["wc"], Hp, Hp)], axis=1)
    b_ac = jnp.concatenate([pad2(p["ba"], 1, Hp), pad2(p["bc"], 1, Hp)], axis=1)

    # block-diagonal head, lane-padded to OUT_PAD:
    #   columns [0, A) <- actor_mean on actor features, column A <- critic_value
    w_head = jnp.zeros((2 * Hp, OUT_PAD), jnp.float32)
    w_head = w_head.at[:H, :A].set(p["wm"])
    w_head = w_head.at[Hp:Hp + H, A].set(p["wv"][:, 0])

    b_head = jnp.zeros((1, OUT_PAD), jnp.float32)
    b_head = b_head.at[:, :A].set(p["bm"])
    b_head = b_head.at[:, A].set(p["bv"][0, 0])

    cast = lambda w: w.astype(weight_dtype)
    return {
        "w1": cast(w1), "b1": b1,
        "w2": cast(w2), "b2": b2,
        "w_ac": cast(w_ac), "b_ac": b_ac,
        "w_head": cast(w_head), "b_head": b_head,
        "std_row": jnp.exp(p["log_std"]).astype(jnp.float32),   # (1, A), batch-invariant
    }


# ---------------------------------------------------------------------------
# Deterministic parameter construction (nn.init.orthogonal_ semantics):
# orthogonal weights with gain sqrt(2) (gain 0.01 for actor_mean), zero biases,
# zero log_std.  Weights stored as (in, out) for the kernel.
# ---------------------------------------------------------------------------
def orthogonal(key, out_dim, in_dim, gain):
    rows, cols = out_dim, in_dim
    flat = jax.random.normal(key, (max(rows, cols), min(rows, cols)), dtype=jnp.float32)
    q, r = jnp.linalg.qr(flat)
    q = q * jnp.sign(jnp.diag(r))  # make decomposition unique
    if rows < cols:
        q = q.T
    return (gain * q[:rows, :cols]).astype(jnp.float32)


def init_params(key, state_dim, action_dim, hidden_dim):
    keys = jax.random.split(key, 6)
    g = float(jnp.sqrt(2.0))
    # torch Linear weight is (out, in); we store its transpose (in, out)
    w1 = orthogonal(keys[0], hidden_dim, state_dim, g).T
    w2 = orthogonal(keys[1], hidden_dim, hidden_dim, g).T
    wa = orthogonal(keys[2], hidden_dim, hidden_dim, g).T
    wm = orthogonal(keys[3], action_dim, hidden_dim, 0.01).T
    wc = orthogonal(keys[4], hidden_dim, hidden_dim, g).T
    wv = orthogonal(keys[5], 1, hidden_dim, g).T

    zeros = lambda n: jnp.zeros((1, n), dtype=jnp.float32)
    return {
        "w1": w1, "b1": zeros(hidden_dim),
        "w2": w2, "b2": zeros(hidden_dim),
        "wa": wa, "ba": zeros(hidden_dim),
        "wm": wm, "bm": zeros(action_dim),
        "log_std": zeros(action_dim),
        "wc": wc, "bc": zeros(hidden_dim),
        "wv": wv, "bv": zeros(1),
    }


# pure-JAX reference mirroring the PyTorch forward; `dtype` optionally applies the
# same bf16 MXU-operand rounding the kernel uses (for a tight fusion-correctness check).
def reference_forward(state, p, dtype=jnp.float32):
    c = lambda a: a.astype(dtype)
    mm = lambda a, b: jnp.dot(c(a), c(b), preferred_element_type=jnp.float32)
    h1 = jax.nn.relu(mm(state, p["w1"]) + p["b1"])
    h2 = jax.nn.relu(mm(h1, p["w2"]) + p["b2"])
    af = jax.nn.relu(mm(h2, p["wa"]) + p["ba"])
    mean = mm(af, p["wm"]) + p["bm"]
    std = jnp.exp(jnp.broadcast_to(p["log_std"], mean.shape))
    cf = jax.nn.relu(mm(h2, p["wc"]) + p["bc"])
    value = mm(cf, p["wv"]) + p["bv"]
    return mean, std, value


if __name__ == "__main__":
    # small shapes consistent with the module's forward
    batch, state_dim, action_dim, hidden_dim = 8, 16, 8, 32

    key = jax.random.PRNGKey(0)
    pkey, xkey = jax.random.split(key)
    params = init_params(pkey, state_dim, action_dim, hidden_dim)
    fused = fuse_params(params)
    state = jax.random.normal(xkey, (batch, state_dim), dtype=jnp.float32)

    mean, std, value = actor_critic_forward(state, fused, action_dim)
    jax.block_until_ready((mean, std, value))

    assert mean.shape == (batch, action_dim)
    assert std.shape == (batch, action_dim)
    assert value.shape == (batch, 1)

    # tight check vs a bf16-matched reference (verifies fusion / padding math)
    m16, s16, v16 = reference_forward(state, params, dtype=jnp.bfloat16)
    assert jnp.allclose(mean, m16, atol=1e-4, rtol=1e-4)
    assert jnp.allclose(std, s16, atol=1e-6, rtol=1e-6)
    assert jnp.allclose(value, v16, atol=1e-4, rtol=1e-4)

    # loose check vs the f32 reference (bf16 MXU operands => relaxed tolerance)
    m32, s32, v32 = reference_forward(state, params, dtype=jnp.float32)
    assert jnp.allclose(mean, m32, atol=1e-1, rtol=1e-1)
    assert jnp.allclose(std, s32, atol=1e-6, rtol=1e-6)
    assert jnp.allclose(value, v32, atol=1e-1, rtol=1e-1)

    print("KERNEL_OK")
</pallas_src>

<mosaic_0001>
module attributes {stable_mosaic.version = 11 : i64} {
  func.func @actor_critic_kernel(%arg0: i32, %arg1: memref<8x16xf32, #tpu.memory_space<vmem>>, %arg2: memref<16x128xbf16, #tpu.memory_space<vmem>>, %arg3: memref<1x128xf32, #tpu.memory_space<vmem>>, %arg4: memref<128x128xbf16, #tpu.memory_space<vmem>>, %arg5: memref<1x128xf32, #tpu.memory_space<vmem>>, %arg6: memref<128x256xbf16, #tpu.memory_space<vmem>>, %arg7: memref<1x256xf32, #tpu.memory_space<vmem>>, %arg8: memref<256x128xbf16, #tpu.memory_space<vmem>>, %arg9: memref<1x128xf32, #tpu.memory_space<vmem>>, %arg10: memref<8x128xf32, #tpu.memory_space<vmem>>) attributes {dimension_semantics = [#tpu.dimension_semantics<parallel>], iteration_bounds = array<i64: 1>, scalar_prefetch = 0 : i64, scratch_operands = 0 : i64, tpu.core_type = #tpu.core_type<tc>, window_params = [{transform_indices = @transform_0, window_bounds = array<i64: 8, 16>}, {pipeline_mode = #tpu.pipeline_mode<synchronous>, transform_indices = @transform_1, window_bounds = array<i64: 16, 128>}, {pipeline_mode = #tpu.pipeline_mode<synchronous>, transform_indices = @transform_2, window_bounds = array<i64: 1, 128>}, {pipeline_mode = #tpu.pipeline_mode<synchronous>, transform_indices = @transform_3, window_bounds = array<i64: 128, 128>}, {pipeline_mode = #tpu.pipeline_mode<synchronous>, transform_indices = @transform_4, window_bounds = array<i64: 1, 128>}, {pipeline_mode = #tpu.pipeline_mode<synchronous>, transform_indices = @transform_5, window_bounds = array<i64: 128, 256>}, {pipeline_mode = #tpu.pipeline_mode<synchronous>, transform_indices = @transform_6, window_bounds = array<i64: 1, 256>}, {pipeline_mode = #tpu.pipeline_mode<synchronous>, transform_indices = @transform_7, window_bounds = array<i64: 256, 128>}, {pipeline_mode = #tpu.pipeline_mode<synchronous>, transform_indices = @transform_8, window_bounds = array<i64: 1, 128>}, {transform_indices = @transform_9, window_bounds = array<i64: 8, 128>}]} {
    %c0 = arith.constant 0 : index
    %c0_0 = arith.constant 0 : index
    %0 = vector.load %arg1[%c0, %c0_0] : memref<8x16xf32, #tpu.memory_space<vmem>>, vector<8x16xf32>
    %1 = arith.truncf %0 : vector<8x16xf32> to vector<8x16xbf16>
    %c0_1 = arith.constant 0 : index
    %c0_2 = arith.constant 0 : index
    %2 = vector.load %arg2[%c0_1, %c0_2] : memref<16x128xbf16, #tpu.memory_space<vmem>>, vector<16x128xbf16>
    %cst = arith.constant dense<0.000000e+00> : vector<8x128xf32>
    %3 = tpu.matmul %1, %2, %cst {dimension_numbers = #tpu.dot_dimension_numbers<[1], [0], [0], [1], [0, 0, 1, 1], [], []>} : vector<8x16xbf16>, vector<16x128xbf16>, vector<8x128xf32> -> vector<8x128xf32>
    %c0_3 = arith.constant 0 : index
    %c0_4 = arith.constant 0 : index
    %4 = vector.load %arg3[%c0_3, %c0_4] : memref<1x128xf32, #tpu.memory_space<vmem>>, vector<1x128xf32>
    %5 = vector.broadcast %4 : vector<1x128xf32> to vector<8x128xf32>
    %6 = arith.addf %3, %5 : vector<8x128xf32>
    %cst_5 = arith.constant 0.000000e+00 : f32
    %7 = vector.broadcast %cst_5 : f32 to vector<8x128xf32>
    %8 = arith.maximumf %6, %7 : vector<8x128xf32>
    %9 = arith.truncf %8 : vector<8x128xf32> to vector<8x128xbf16>
    %c0_6 = arith.constant 0 : index
    %c0_7 = arith.constant 0 : index
    %10 = vector.load %arg4[%c0_6, %c0_7] : memref<128x128xbf16, #tpu.memory_space<vmem>>, vector<128x128xbf16>
    %cst_8 = arith.constant dense<0.000000e+00> : vector<8x128xf32>
    %11 = tpu.matmul %9, %10, %cst_8 {dimension_numbers = #tpu.dot_dimension_numbers<[1], [0], [0], [1], [0, 0, 1, 1], [], []>} : vector<8x128xbf16>, vector<128x128xbf16>, vector<8x128xf32> -> vector<8x128xf32>
    %c0_9 = arith.constant 0 : index
    %c0_10 = arith.constant 0 : index
    %12 = vector.load %arg5[%c0_9, %c0_10] : memref<1x128xf32, #tpu.memory_space<vmem>>, vector<1x128xf32>
    %13 = vector.broadcast %12 : vector<1x128xf32> to vector<8x128xf32>
    %14 = arith.addf %11, %13 : vector<8x128xf32>
    %cst_11 = arith.constant 0.000000e+00 : f32
    %15 = vector.broadcast %cst_11 : f32 to vector<8x128xf32>
    %16 = arith.maximumf %14, %15 : vector<8x128xf32>
    %17 = arith.truncf %16 : vector<8x128xf32> to vector<8x128xbf16>
    %c0_12 = arith.constant 0 : index
    %c0_13 = arith.constant 0 : index
    %18 = vector.load %arg6[%c0_12, %c0_13] : memref<128x256xbf16, #tpu.memory_space<vmem>>, vector<128x256xbf16>
    %cst_14 = arith.constant dense<0.000000e+00> : vector<8x256xf32>
    %19 = tpu.matmul %17, %18, %cst_14 {dimension_numbers = #tpu.dot_dimension_numbers<[1], [0], [0], [1], [0, 0, 1, 1], [], []>} : vector<8x128xbf16>, vector<128x256xbf16>, vector<8x256xf32> -> vector<8x256xf32>
    %c0_15 = arith.constant 0 : index
    %c0_16 = arith.constant 0 : index
    %20 = vector.load %arg7[%c0_15, %c0_16] : memref<1x256xf32, #tpu.memory_space<vmem>>, vector<1x256xf32>
    %21 = vector.broadcast %20 : vector<1x256xf32> to vector<8x256xf32>
    %22 = arith.addf %19, %21 : vector<8x256xf32>
    %cst_17 = arith.constant 0.000000e+00 : f32
    %23 = vector.broadcast %cst_17 : f32 to vector<8x256xf32>
    %24 = arith.maximumf %22, %23 : vector<8x256xf32>
    %25 = arith.truncf %24 : vector<8x256xf32> to vector<8x256xbf16>
    %c0_18 = arith.constant 0 : index
    %c0_19 = arith.constant 0 : index
    %26 = vector.load %arg8[%c0_18, %c0_19] : memref<256x128xbf16, #tpu.memory_space<vmem>>, vector<256x128xbf16>
    %cst_20 = arith.constant dense<0.000000e+00> : vector<8x128xf32>
    %27 = tpu.matmul %25, %26, %cst_20 {dimension_numbers = #tpu.dot_dimension_numbers<[1], [0], [0], [1], [0, 0, 1, 1], [], []>} : vector<8x256xbf16>, vector<256x128xbf16>, vector<8x128xf32> -> vector<8x128xf32>
    %c0_21 = arith.constant 0 : index
    %c0_22 = arith.constant 0 : index
    %28 = vector.load %arg9[%c0_21, %c0_22] : memref<1x128xf32, #tpu.memory_space<vmem>>, vector<1x128xf32>
    %29 = vector.broadcast %28 : vector<1x128xf32> to vector<8x128xf32>
    %30 = arith.addf %27, %29 : vector<8x128xf32>
    %c0_23 = arith.constant 0 : index
    %c0_24 = arith.constant 0 : index
    %31 = vector.load %arg10[%c0_23, %c0_24] : memref<8x128xf32, #tpu.memory_space<vmem>>, vector<8x128xf32>
    tpu.vector_store %arg10[%c0_23, %c0_24], %30 {strides = array<i32>} : memref<8x128xf32, #tpu.memory_space<vmem>>, vector<8x128xf32>,
    return
  }
  func.func @transform_0(%arg0: i32) -> (i32, i32) {
    %c0_i32 = arith.constant 0 : i32
    %c0_i32_0 = arith.constant 0 : i32
    return %arg0, %c0_i32 : i32, i32
  }
  func.func @transform_1(%arg0: i32) -> (i32, i32) {
    %c0_i32 = arith.constant 0 : i32
    %c0_i32_0 = arith.constant 0 : i32
    %c0_i32_1 = arith.constant 0 : i32
    return %c0_i32, %c0_i32_0 : i32, i32
  }
  func.func @transform_2(%arg0: i32) -> (i32, i32) {
    %c0_i32 = arith.constant 0 : i32
    %c0_i32_0 = arith.constant 0 : i32
    %c0_i32_1 = arith.constant 0 : i32
    return %c0_i32, %c0_i32_0 : i32, i32
  }
  func.func @transform_3(%arg0: i32) -> (i32, i32) {
    %c0_i32 = arith.constant 0 : i32
    %c0_i32_0 = arith.constant 0 : i32
    %c0_i32_1 = arith.constant 0 : i32
    return %c0_i32, %c0_i32_0 : i32, i32
  }
  func.func @transform_4(%arg0: i32) -> (i32, i32) {
    %c0_i32 = arith.constant 0 : i32
    %c0_i32_0 = arith.constant 0 : i32
    %c0_i32_1 = arith.constant 0 : i32
    return %c0_i32, %c0_i32_0 : i32, i32
  }
  func.func @transform_5(%arg0: i32) -> (i32, i32) {
    %c0_i32 = arith.constant 0 : i32
    %c0_i32_0 = arith.constant 0 : i32
    %c0_i32_1 = arith.constant 0 : i32
    return %c0_i32, %c0_i32_0 : i32, i32
  }
  func.func @transform_6(%arg0: i32) -> (i32, i32) {
    %c0_i32 = arith.constant 0 : i32
    %c0_i32_0 = arith.constant 0 : i32
    %c0_i32_1 = arith.constant 0 : i32
    return %c0_i32, %c0_i32_0 : i32, i32
  }
  func.func @transform_7(%arg0: i32) -> (i32, i32) {
    %c0_i32 = arith.constant 0 : i32
    %c0_i32_0 = arith.constant 0 : i32
    %c0_i32_1 = arith.constant 0 : i32
    return %c0_i32, %c0_i32_0 : i32, i32
  }
  func.func @transform_8(%arg0: i32) -> (i32, i32) {
    %c0_i32 = arith.constant 0 : i32
    %c0_i32_0 = arith.constant 0 : i32
    %c0_i32_1 = arith.constant 0 : i32
    return %c0_i32, %c0_i32_0 : i32, i32
  }
  func.func @transform_9(%arg0: i32) -> (i32, i32) {
    %c0_i32 = arith.constant 0 : i32
    %c0_i32_0 = arith.constant 0 : i32
    return %arg0, %c0_i32 : i32, i32
  }
}

</mosaic_0001>

<llo_original>
// kernel: actor_critic_forward.1
$region0: #{actor_critic_forward.1}
  #allocation0 [shape = 'u32[]', space=smem, size = 0x4, offset = 0x4, fixed_abs, tag = 'smem constant byte address 0x4 - core index']
  #allocation1 [shape = 'u32[144,128]{1,0:T(1,128)}', space=vmem, size = 0x12000, scoped, tag = 'internal scratch']
  %s0 = inlined_call_operand.hbm [shape: f32[8,16], index: 0, kind: input, shape index: {}]
  %s1 = inlined_call_operand.vmem [shape: bf16[16,128], index: 1, kind: input, shape index: {}]
  %s2 = inlined_call_operand.vmem [shape: f32[1,128], index: 2, kind: input, shape index: {}]
  %s3 = inlined_call_operand.hbm [shape: bf16[128,128], index: 3, kind: input, shape index: {}]
  %s4 = inlined_call_operand.vmem [shape: f32[1,128], index: 4, kind: input, shape index: {}]
  %s5 = inlined_call_operand.hbm [shape: bf16[128,256], index: 5, kind: input, shape index: {}]
  %s6 = inlined_call_operand.vmem [shape: f32[1,256], index: 6, kind: input, shape index: {}]
  %s7 = inlined_call_operand.hbm [shape: bf16[256,128], index: 7, kind: input, shape index: {}]
  %s8 = inlined_call_operand.vmem [shape: f32[1,128], index: 8, kind: input, shape index: {}]
  %s9 = inlined_call_operand.vmem [shape: f32[8,128], index: 9, kind: output, shape index: {}]
  %s10 = sld [smem:[#allocation0]]
  $region62: #{actor_critic_forward.1} parent=0
    _
  %s12 = ssub.s32 1, %s10
  %s13 = scalar_select 0, %s12, %s10
  $region1: #{actor_critic_forward.1} parent=0
    #allocation2 [shape = 'u8[4096]{0}', space=vmem, size = 0x1000, scoped, tag = 'input window, operand 0, single buffered']
    #allocation3 [shape = 's32[1]{0}', space=sflag, size = 0x4, scoped, tag = 'scoped memory for actor_critic_forward.1']
    #allocation4 [shape = 'u8[32768]{0}', space=vmem, size = 0x8000, scoped, tag = 'input window, operand 3, single buffered']
    #allocation5 [shape = 's32[1]{0}', space=sflag, size = 0x4, scoped, tag = 'scoped memory for actor_critic_forward.1']
    #allocation6 [shape = 'u8[65536]{0}', space=vmem, size = 0x10000, scoped, tag = 'input window, operand 5, single buffered']
    #allocation7 [shape = 'u8[65536]{0}', space=vmem, size = 0x10000, scoped, tag = 'input window, operand 7, single buffered']
    #allocation8 [shape = 's32[1]{0}', space=sflag, size = 0x4, scoped, tag = 'scoped memory for actor_critic_forward.1']
    %14 = vsyncpa [#allocation3], 0
    %15 = vsyncpa [#allocation5], 0
    %16 = vsyncpa [#allocation8], 0
    // Predicated region
    $region2: #{actor_critic_forward.1} parent=1 // pred_check
      _
    $region3: #{actor_critic_forward.1} parent=1 // pred_check_branch
      %18 = sbr.rel (0) target = $region5
    $region4: #{actor_critic_forward.1} parent=1 // pred_region
      %s20 = ssub.s32 128, 128
      %21 = vsyncadd [#allocation3], %s20
      %s23 = sshll.u32 [#allocation2], 4
      %s24 = int_to_ptr.vmem [resolvable:$true] %s23
      %26 = dma.hbm_to_vmem [thread:$0]  %s0, 128, %s24, [#allocation3]
    $region5: #{actor_critic_forward.1} parent=1 // pred_fallthru
      _
    // Predicated region
    $region6: #{actor_critic_forward.1} parent=1 // pred_check
      _
    $region7: #{actor_critic_forward.1} parent=1 // pred_check_branch
      %28 = sbr.rel (0) target = $region9
    $region8: #{actor_critic_forward.1} parent=1 // pred_region
      _
    $region9: #{actor_critic_forward.1} parent=1 // pred_fallthru
      _
    // Predicated region
    $region10: #{actor_critic_forward.1} parent=1 // pred_check
      _
    $region11: #{actor_critic_forward.1} parent=1 // pred_check_branch
      %30 = sbr.rel (0) target = $region13
    $region12: #{actor_critic_forward.1} parent=1 // pred_region
      _
    $region13: #{actor_critic_forward.1} parent=1 // pred_fallthru
      _
    // Predicated region
    $region14: #{actor_critic_forward.1} parent=1 // pred_check
      _
    $region15: #{actor_critic_forward.1} parent=1 // pred_check_branch
      %32 = sbr.rel (0) target = $region17
    $region16: #{actor_critic_forward.1} parent=1 // pred_region
      %s34 = ssub.s32 1024, 1024
      %35 = vsyncadd [#allocation5], %s34
      %s36 = sshll.u32 [#allocation4], 4
      %s37 = int_to_ptr.vmem [resolvable:$true] %s36
      %42 = dma.hbm_to_vmem [thread:$0]  %s3, 1024, %s37, [#allocation5], 64, 64, 4
    $region17: #{actor_critic_forward.1} parent=1 // pred_fallthru
      _
    // Predicated region
    $region18: #{actor_critic_forward.1} parent=1 // pred_check
      _
    $region19: #{actor_critic_forward.1} parent=1 // pred_check_branch
      %44 = sbr.rel (0) target = $region21
    $region20: #{actor_critic_forward.1} parent=1 // pred_region
      _
    $region21: #{actor_critic_forward.1} parent=1 // pred_fallthru
      _
    // Predicated region
    $region22: #{actor_critic_forward.1} parent=1 // pred_check
      _
    $region23: #{actor_critic_forward.1} parent=1 // pred_check_branch
      %46 = sbr.rel (0) target = $region25
    $region24: #{actor_critic_forward.1} parent=1 // pred_region
      %s48 = ssub.s32 2048, 2048
      %49 = vsyncadd [#allocation5], %s48
      %s50 = sshll.u32 [#allocation6], 4
      %s51 = int_to_ptr.vmem [resolvable:$true] %s50
      %56 = dma.hbm_to_vmem [thread:$0]  %s5, 2048, %s51, [#allocation5], 128, 128, 8
    $region25: #{actor_critic_forward.1} parent=1 // pred_fallthru
      _
    // Predicated region
    $region26: #{actor_critic_forward.1} parent=1 // pred_check
      _
    $region27: #{actor_critic_forward.1} parent=1 // pred_check_branch
      %58 = sbr.rel (0) target = $region29
    $region28: #{actor_critic_forward.1} parent=1 // pred_region
      _
    $region29: #{actor_critic_forward.1} parent=1 // pred_fallthru
      _
    // Predicated region
    $region30: #{actor_critic_forward.1} parent=1 // pred_check
      _
    $region31: #{actor_critic_forward.1} parent=1 // pred_check_branch
      %60 = sbr.rel (0) target = $region33
    $region32: #{actor_critic_forward.1} parent=1 // pred_region
      %s62 = ssub.s32 2048, 2048
      %63 = vsyncadd [#allocation8], %s62
      %s64 = sshll.u32 [#allocation7], 4
      %s65 = int_to_ptr.vmem [resolvable:$true] %s64
      %70 = dma.hbm_to_vmem [thread:$0]  %s7, 2048, %s65, [#allocation8], 64, 64, 4
    $region33: #{actor_critic_forward.1} parent=1 // pred_fallthru
      _
    // Predicated region
    $region34: #{actor_critic_forward.1} parent=1 // pred_check
      _
    $region35: #{actor_critic_forward.1} parent=1 // pred_check_branch
      %72 = sbr.rel (0) target = $region37
    $region36: #{actor_critic_forward.1} parent=1 // pred_region
      _
    $region37: #{actor_critic_forward.1} parent=1 // pred_fallthru
      _
    // Predicated region
    $region38: #{actor_critic_forward.1} parent=1 // pred_check
      _
    $region39: #{actor_critic_forward.1} parent=1 // pred_check_branch
      %74 = sbr.rel (0) target = $region41
    $region40: #{actor_critic_forward.1} parent=1 // pred_region
      %75 = dma.done [#allocation3], 128
    $region41: #{actor_critic_forward.1} parent=1 // pred_fallthru
      _
    // Predicated region
    $region42: #{actor_critic_forward.1} parent=1 // pred_check
      _
    $region43: #{actor_critic_forward.1} parent=1 // pred_check_branch
      %77 = sbr.rel (0) target = $region45
    $region44: #{actor_critic_forward.1} parent=1 // pred_region
      %78 = dma.done [#allocation5], 1024
    $region45: #{actor_critic_forward.1} parent=1 // pred_fallthru
      _
    // Predicated region
    $region46: #{actor_critic_forward.1} parent=1 // pred_check
      _
    $region47: #{actor_critic_forward.1} parent=1 // pred_check_branch
      %80 = sbr.rel (0) target = $region49
    $region48: #{actor_critic_forward.1} parent=1 // pred_region
      %81 = dma.done [#allocation5], 2048
    $region49: #{actor_critic_forward.1} parent=1 // pred_fallthru
      _
    // Predicated region
    $region50: #{actor_critic_forward.1} parent=1 // pred_check
      _
    $region51: #{actor_critic_forward.1} parent=1 // pred_check_branch
      %83 = sbr.rel (0) target = $region53
    $region52: #{actor_critic_forward.1} parent=1 // pred_region
      %84 = dma.done [#allocation8], 2048
    $region53: #{actor_critic_forward.1} parent=1 // pred_fallthru
      _
    %v86 = vld [vmem:[#allocation2] sm:$0xff]
    %v87 = vpack.c.bf16 %v86, %v86
    %v88 = vld [vmem:[%s1] sm:$0xf]
    %v89 = vld [vmem:[%s1 + $0x4] sm:$0xf]
    %v90 = vld [vmem:[%s2] sm:$0x1]
    %v92 = vlaneseq
    %v93 = vshrl.u32 %v92, 7
    %v94 = vsub.s32 0, %v93
    %v95 = vrot.slane %v90, %v94
    %v99 = vunpack.c.l.b16 %v88
    %v100 = vunpack.c.l.b16 %v89
    %v101 = vpack.c.b16 %v100, %v99
    %vm103 = vcmask 130048
    %v105 = vsel %vm103, %v87, 0
    %107 = vmatprep.subr.bf16.mxu0 0
    %108 = vmatpush1.bf16.msra.mxu0 %v101
    %109 = vmatprep.subr.bf16.mxu0 0
    %110 = vmatpush1.bf16.msra.mxu0 0
    %111 = vmatprep.subr.bf16.mxu0 0
    %112 = vmatpush1.bf16.msra.mxu0 0
    %113 = vmatprep.subr.bf16.mxu0 0
    %114 = vmatpush1.bf16.msra.mxu0 0
    %115 = vmatprep.subr.bf16.mxu0 0
    %116 = vmatpush1.bf16.msra.mxu0 0
    %117 = vmatprep.subr.bf16.mxu0 0
    %118 = vmatpush1.bf16.msra.mxu0 0
    %119 = vmatprep.subr.bf16.mxu0 0
    %120 = vmatpush1.bf16.msra.mxu0 0
    %121 = vmatprep.subr.bf16.mxu0 0
    %122 = vmatpush1.bf16.msra.mxu0 0
    %123 = vmatprep.subr.bf16.mxu0 0
    %124 = vmatpush1.bf16.msra.mxu0 0
    %125 = vmatprep.subr.bf16.mxu0 0
    %126 = vmatpush1.bf16.msra.mxu0 0
    %127 = vmatprep.subr.bf16.mxu0 0
    %128 = vmatpush1.bf16.msra.mxu0 0
    %129 = vmatprep.subr.bf16.mxu0 0
    %130 = vmatpush1.bf16.msra.mxu0 0
    %131 = vmatprep.subr.bf16.mxu0 0
    %132 = vmatpush1.bf16.msra.mxu0 0
    %133 = vmatprep.subr.bf16.mxu0 0
    %134 = vmatpush1.bf16.msra.mxu0 0
    %135 = vmatprep.subr.bf16.mxu0 0
    %136 = vmatpush1.bf16.msra.mxu0 0
    %137 = vmatprep.subr.bf16.mxu0 0
    %138 = vmatpush1.bf16.msra.mxu0 0
    %139 = vmatprep.mubr.bf16.mxu0 0
    %140 = vmatmul.mubr.bf16.gmra.mrb[0].mxu0 %v105
    %v141 = vpop.f32.mrb[0].mxu0
    %v142 = vadd.f32 %v95, %v141
    %v143 = vpop.f32.mrb[0].mxu0
    %v144 = vpop.f32.mrb[0].mxu0
    %v145 = vpop.f32.mrb[0].mxu0
    %146 = vdwg.mxu0
    %v147 = vmax.f32 %v142, 0.0
    %v148 = vpack.c.bf16 %v147, %v147
    %v149 = vld [vmem:[#allocation4] sm:$0xf]
    %v150 = vld [vmem:[#allocation4 + $0x4] sm:$0xf]
    %v151 = vld [vmem:[#allocation4 + $0x8] sm:$0xf]
    %v152 = vld [vmem:[#allocation4 + $0xc] sm:$0xf]
    %v153 = vld [vmem:[#allocation4 + $0x10] sm:$0xf]
    %v154 = vld [vmem:[#allocation4 + $0x14] sm:$0xf]
    %v155 = vld [vmem:[#allocation4 + $0x18] sm:$0xf]
    %v156 = vld [vmem:[#allocation4 + $0x1c] sm:$0xf]
    %v157 = vld [vmem:[#allocation4 + $0x20] sm:$0xf]
    %v158 = vld [vmem:[#allocation4 + $0x24] sm:$0xf]
    %v159 = vld [vmem:[#allocation4 + $0x28] sm:$0xf]
    %v160 = vld [vmem:[#allocation4 + $0x2c] sm:$0xf]
    %v161 = vld [vmem:[#allocation4 + $0x30] sm:$0xf]
    %v162 = vld [vmem:[#allocation4 + $0x34] sm:$0xf]
    %v163 = vld [vmem:[#allocation4 + $0x38] sm:$0xf]
    %v164 = vld [vmem:[#allocation4 + $0x3c] sm:$0xf]
    %v165 = vld [vmem:[%s4] sm:$0x1]
    %v167 = vlaneseq
    %v168 = vshrl.u32 %v167, 7
    %v169 = vsub.s32 0, %v168
    %v170 = vrot.slane %v165, %v169
    %v188 = vunpack.c.l.b16 %v149
    %v189 = vunpack.c.l.b16 %v150
    %v190 = vunpack.c.l.b16 %v151
    %v191 = vunpack.c.l.b16 %v152
    %v192 = vunpack.c.l.b16 %v153
    %v193 = vunpack.c.l.b16 %v154
    %v194 = vunpack.c.l.b16 %v155
    %v195 = vunpack.c.l.b16 %v156
    %v196 = vunpack.c.l.b16 %v157
    %v197 = vunpack.c.l.b16 %v158
    %v198 = vunpack.c.l.b16 %v159
    %v199 = vunpack.c.l.b16 %v160
    %v200 = vunpack.c.l.b16 %v161
    %v201 = vunpack.c.l.b16 %v162
    %v202 = vunpack.c.l.b16 %v163
    %v203 = vunpack.c.l.b16 %v164
    %v204 = vpack.c.b16 %v189, %v188
    %v205 = vpack.c.b16 %v191, %v190
    %v206 = vpack.c.b16 %v193, %v192
    %v207 = vpack.c.b16 %v195, %v194
    %v208 = vpack.c.b16 %v197, %v196
    %v209 = vpack.c.b16 %v199, %v198
    %v210 = vpack.c.b16 %v201, %v200
    %v211 = vpack.c.b16 %v203, %v202
    %220 = vmatprep.subr.bf16.mxu0 0
    %221 = vmatpush1.bf16.msra.mxu0 %v204
    %222 = vmatprep.subr.bf16.mxu0 0
    %223 = vmatpush1.bf16.msra.mxu0 %v205
    %224 = vmatprep.subr.bf16.mxu0 0
    %225 = vmatpush1.bf16.msra.mxu0 %v206
    %226 = vmatprep.subr.bf16.mxu0 0
    %227 = vmatpush1.bf16.msra.mxu0 %v207
    %228 = vmatprep.subr.bf16.mxu0 0
    %229 = vmatpush1.bf16.msra.mxu0 %v208
    %230 = vmatprep.subr.bf16.mxu0 0
    %231 = vmatpush1.bf16.msra.mxu0 %v209
    %232 = vmatprep.subr.bf16.mxu0 0
    %233 = vmatpush1.bf16.msra.mxu0 %v210
    %234 = vmatprep.subr.bf16.mxu0 0
    %235 = vmatpush1.bf16.msra.mxu0 %v211
    %236 = vmatprep.subr.bf16.mxu0 0
    %237 = vmatpush1.bf16.msra.mxu0 0
    %238 = vmatprep.subr.bf16.mxu0 0
    %239 = vmatpush1.bf16.msra.mxu0 0
    %240 = vmatprep.subr.bf16.mxu0 0
    %241 = vmatpush1.bf16.msra.mxu0 0
    %242 = vmatprep.subr.bf16.mxu0 0
    %243 = vmatpush1.bf16.msra.mxu0 0
    %244 = vmatprep.subr.bf16.mxu0 0
    %245 = vmatpush1.bf16.msra.mxu0 0
    %246 = vmatprep.subr.bf16.mxu0 0
    %247 = vmatpush1.bf16.msra.mxu0 0
    %248 = vmatprep.subr.bf16.mxu0 0
    %249 = vmatpush1.bf16.msra.mxu0 0
    %250 = vmatprep.subr.bf16.mxu0 0
    %251 = vmatpush1.bf16.msra.mxu0 0
    %252 = vmatprep.mubr.bf16.mxu0 0
    %253 = vmatmul.mubr.bf16.gmra.mrb[0].mxu0 %v148
    %v254 = vpop.f32.mrb[0].mxu0
    %v255 = vadd.f32 %v170, %v254
    %v256 = vpop.f32.mrb[0].mxu0
    %v257 = vpop.f32.mrb[0].mxu0
    %v258 = vpop.f32.mrb[0].mxu0
    %259 = vdwg.mxu0
    %v260 = vmax.f32 %v255, 0.0
    %v261 = vpack.c.bf16 %v260, %v260
    %v262 = vld [vmem:[#allocation6] sm:$0xff]
    %v263 = vld [vmem:[#allocation6 + $0x8] sm:$0xff]
    %v264 = vld [vmem:[#allocation6 + $0x10] sm:$0xff]
    %v265 = vld [vmem:[#allocation6 + $0x18] sm:$0xff]
    %v266 = vld [vmem:[#allocation6 + $0x20] sm:$0xff]
    %v267 = vld [vmem:[#allocation6 + $0x28] sm:$0xff]
    %v268 = vld [vmem:[#allocation6 + $0x30] sm:$0xff]
    %v269 = vld [vmem:[#allocation6 + $0x38] sm:$0xff]
    %v270 = vld [vmem:[#allocation6 + $0x40] sm:$0xff]
    %v271 = vld [vmem:[#allocation6 + $0x48] sm:$0xff]
    %v272 = vld [vmem:[#allocation6 + $0x50] sm:$0xff]
    %v273 = vld [vmem:[#allocation6 + $0x58] sm:$0xff]
    %v274 = vld [vmem:[#allocation6 + $0x60] sm:$0xff]
    %v275 = vld [vmem:[#allocation6 + $0x68] sm:$0xff]
    %v276 = vld [vmem:[#allocation6 + $0x70] sm:$0xff]
    %v277 = vld [vmem:[#allocation6 + $0x78] sm:$0xff]
    %v278 = vld [vmem:[%s6] sm:$0x3]
    %v280 = vlaneseq
    %v281 = vshrl.u32 %v280, 7
    %v282 = vsub.s32 0, %v281
    %v283 = vrot.slane %v278, %v282
    %v284 = vlaneseq
    %v285 = vshrl.u32 %v284, 7
    %v286 = vsub.s32 1, %v285
    %v287 = vrot.slane %v278, %v286
    %v306 = vunpack.c.l.b16 %v262
    %v307 = vunpack.c.h.b16 %v262
    %v308 = vunpack.c.l.b16 %v263
    %v309 = vunpack.c.h.b16 %v263
    %v310 = vunpack.c.l.b16 %v264
    %v311 = vunpack.c.h.b16 %v264
    %v312 = vunpack.c.l.b16 %v265
    %v313 = vunpack.c.h.b16 %v265
    %v314 = vunpack.c.l.b16 %v266
    %v315 = vunpack.c.h.b16 %v266
    %v316 = vunpack.c.l.b16 %v267
    %v317 = vunpack.c.h.b16 %v267
    %v318 = vunpack.c.l.b16 %v268
    %v319 = vunpack.c.h.b16 %v268
    %v320 = vunpack.c.l.b16 %v269
    %v321 = vunpack.c.h.b16 %v269
    %v322 = vunpack.c.l.b16 %v270
    %v323 = vunpack.c.h.b16 %v270
    %v324 = vunpack.c.l.b16 %v271
    %v325 = vunpack.c.h.b16 %v271
    %v326 = vunpack.c.l.b16 %v272
    %v327 = vunpack.c.h.b16 %v272
    %v328 = vunpack.c.l.b16 %v273
    %v329 = vunpack.c.h.b16 %v273
    %v330 = vunpack.c.l.b16 %v274
    %v331 = vunpack.c.h.b16 %v274
    %v332 = vunpack.c.l.b16 %v275
    %v333 = vunpack.c.h.b16 %v275
    %v334 = vunpack.c.l.b16 %v276
    %v335 = vunpack.c.h.b16 %v276
    %v336 = vunpack.c.l.b16 %v277
    %v337 = vunpack.c.h.b16 %v277
    %v338 = vpack.c.b16 %v308, %v306
    %v339 = vpack.c.b16 %v309, %v307
    %v340 = vpack.c.b16 %v312, %v310
    %v341 = vpack.c.b16 %v313, %v311
    %v342 = vpack.c.b16 %v316, %v314
    %v343 = vpack.c.b16 %v317, %v315
    %v344 = vpack.c.b16 %v320, %v318
    %v345 = vpack.c.b16 %v321, %v319
    %v346 = vpack.c.b16 %v324, %v322
    %v347 = vpack.c.b16 %v325, %v323
    %v348 = vpack.c.b16 %v328, %v326
    %v349 = vpack.c.b16 %v329, %v327
    %v350 = vpack.c.b16 %v332, %v330
    %v351 = vpack.c.b16 %v333, %v331
    %v352 = vpack.c.b16 %v336, %v334
    %v353 = vpack.c.b16 %v337, %v335
    %370 = vmatprep.subr.bf16.mxu0 %v339
    %371 = vmatpush1.bf16.msra.mxu0 %v338
    %372 = vmatprep.subr.bf16.mxu0 %v341
    %373 = vmatpush1.bf16.msra.mxu0 %v340
    %374 = vmatprep.subr.bf16.mxu0 %v343
    %375 = vmatpush1.bf16.msra.mxu0 %v342
    %376 = vmatprep.subr.bf16.mxu0 %v345
    %377 = vmatpush1.bf16.msra.mxu0 %v344
    %378 = vmatprep.subr.bf16.mxu0 %v347
    %379 = vmatpush1.bf16.msra.mxu0 %v346
    %380 = vmatprep.subr.bf16.mxu0 %v349
    %381 = vmatpush1.bf16.msra.mxu0 %v348
    %382 = vmatprep.subr.bf16.mxu0 %v351
    %383 = vmatpush1.bf16.msra.mxu0 %v350
    %384 = vmatprep.subr.bf16.mxu0 %v353
    %385 = vmatpush1.bf16.msra.mxu0 %v352
    %386 = vmatprep.subr.bf16.mxu0 0
    %387 = vmatpush1.bf16.msra.mxu0 0
    %388 = vmatprep.subr.bf16.mxu0 0
    %389 = vmatpush1.bf16.msra.mxu0 0
    %390 = vmatprep.subr.bf16.mxu0 0
    %391 = vmatpush1.bf16.msra.mxu0 0
    %392 = vmatprep.subr.bf16.mxu0 0
    %393 = vmatpush1.bf16.msra.mxu0 0
    %394 = vmatprep.subr.bf16.mxu0 0
    %395 = vmatpush1.bf16.msra.mxu0 0
    %396 = vmatprep.subr.bf16.mxu0 0
    %397 = vmatpush1.bf16.msra.mxu0 0
    %398 = vmatprep.subr.bf16.mxu0 0
    %399 = vmatpush1.bf16.msra.mxu0 0
    %400 = vmatprep.subr.bf16.mxu0 0
    %401 = vmatpush1.bf16.msra.mxu0 0
    %402 = vmatprep.mubr.bf16.mxu0 0
    %403 = vmatmul.mubr.bf16.gmra.mrb[0].mxu0 %v261
    %v404 = vpop.f32.mrb[0].mxu0
    %v405 = vadd.f32 %v283, %v404
    %v406 = vpop.f32.mrb[0].mxu0
    %v407 = vadd.f32 %v287, %v406
    %v408 = vpop.f32.mrb[0].mxu0
    %v409 = vpop.f32.mrb[0].mxu0
    %410 = vdwg.mxu0
    %v411 = vmax.f32 %v405, 0.0
    %v412 = vmax.f32 %v407, 0.0
    %v413 = vpack.c.bf16 %v411, %v411
    %v414 = vpack.c.bf16 %v412, %v412
    %v415 = vld [vmem:[#allocation7] sm:$0xf]
    %v416 = vld [vmem:[#allocation7 + $0x4] sm:$0xf]
    %v417 = vld [vmem:[#allocation7 + $0x8] sm:$0xf]
    %v418 = vld [vmem:[#allocation7 + $0xc] sm:$0xf]
    %v419 = vld [vmem:[#allocation7 + $0x10] sm:$0xf]
    %v420 = vld [vmem:[#allocation7 + $0x14] sm:$0xf]
    %v421 = vld [vmem:[#allocation7 + $0x18] sm:$0xf]
    %v422 = vld [vmem:[#allocation7 + $0x1c] sm:$0xf]
    %v423 = vld [vmem:[#allocation7 + $0x20] sm:$0xf]
    %v424 = vld [vmem:[#allocation7 + $0x24] sm:$0xf]
    %v425 = vld [vmem:[#allocation7 + $0x28] sm:$0xf]
    %v426 = vld [vmem:[#allocation7 + $0x2c] sm:$0xf]
    %v427 = vld [vmem:[#allocation7 + $0x30] sm:$0xf]
    %v428 = vld [vmem:[#allocation7 + $0x34] sm:$0xf]
    %v429 = vld [vmem:[#allocation7 + $0x38] sm:$0xf]
    %v430 = vld [vmem:[#allocation7 + $0x3c] sm:$0xf]
    %v431 = vld [vmem:[#allocation7 + $0x40] sm:$0xf]
    %v432 = vld [vmem:[#allocation7 + $0x44] sm:$0xf]
    %v433 = vld [vmem:[#allocation7 + $0x48] sm:$0xf]
    %v434 = vld [vmem:[#allocation7 + $0x4c] sm:$0xf]
    %v435 = vld [vmem:[#allocation7 + $0x50] sm:$0xf]
    %v436 = vld [vmem:[#allocation7 + $0x54] sm:$0xf]
    %v437 = vld [vmem:[#allocation7 + $0x58] sm:$0xf]
    %v438 = vld [vmem:[#allocation7 + $0x5c] sm:$0xf]
    %v439 = vld [vmem:[#allocation7 + $0x60] sm:$0xf]
    %v440 = vld [vmem:[#allocation7 + $0x64] sm:$0xf]
    %v441 = vld [vmem:[#allocation7 + $0x68] sm:$0xf]
    %v442 = vld [vmem:[#allocation7 + $0x6c] sm:$0xf]
    %v443 = vld [vmem:[#allocation7 + $0x70] sm:$0xf]
    %v444 = vld [vmem:[#allocation7 + $0x74] sm:$0xf]
    %v445 = vld [vmem:[#allocation7 + $0x78] sm:$0xf]
    %v446 = vld [vmem:[#allocation7 + $0x7c] sm:$0xf]
    %v447 = vld [vmem:[%s8] sm:$0x1]
    %v449 = vlaneseq
    %v450 = vshrl.u32 %v449, 7
    %v451 = vsub.s32 0, %v450
    %v452 = vrot.slane %v447, %v451
    %v486 = vunpack.c.l.b16 %v415
    %v487 = vunpack.c.l.b16 %v416
    %v488 = vunpack.c.l.b16 %v417
    %v489 = vunpack.c.l.b16 %v418
    %v490 = vunpack.c.l.b16 %v419
    %v491 = vunpack.c.l.b16 %v420
    %v492 = vunpack.c.l.b16 %v421
    %v493 = vunpack.c.l.b16 %v422
    %v494 = vunpack.c.l.b16 %v423
    %v495 = vunpack.c.l.b16 %v424
    %v496 = vunpack.c.l.b16 %v425
    %v497 = vunpack.c.l.b16 %v426
    %v498 = vunpack.c.l.b16 %v427
    %v499 = vunpack.c.l.b16 %v428
    %v500 = vunpack.c.l.b16 %v429
    %v501 = vunpack.c.l.b16 %v430
    %v502 = vunpack.c.l.b16 %v431
    %v503 = vunpack.c.l.b16 %v432
    %v504 = vunpack.c.l.b16 %v433
    %v505 = vunpack.c.l.b16 %v434
    %v506 = vunpack.c.l.b16 %v435
    %v507 = vunpack.c.l.b16 %v436
    %v508 = vunpack.c.l.b16 %v437
    %v509 = vunpack.c.l.b16 %v438
    %v510 = vunpack.c.l.b16 %v439
    %v511 = vunpack.c.l.b16 %v440
    %v512 = vunpack.c.l.b16 %v441
    %v513 = vunpack.c.l.b16 %v442
    %v514 = vunpack.c.l.b16 %v443
    %v515 = vunpack.c.l.b16 %v444
    %v516 = vunpack.c.l.b16 %v445
    %v517 = vunpack.c.l.b16 %v446
    %v518 = vpack.c.b16 %v487, %v486
    %v519 = vpack.c.b16 %v489, %v488
    %v520 = vpack.c.b16 %v491, %v490
    %v521 = vpack.c.b16 %v493, %v492
    %v522 = vpack.c.b16 %v495, %v494
    %v523 = vpack.c.b16 %v497, %v496
    %v524 = vpack.c.b16 %v499, %v498
    %v525 = vpack.c.b16 %v501, %v500
    %v526 = vpack.c.b16 %v503, %v502
    %v527 = vpack.c.b16 %v505, %v504
    %v528 = vpack.c.b16 %v507, %v506
    %v529 = vpack.c.b16 %v509, %v508
    %v530 = vpack.c.b16 %v511, %v510
    %v531 = vpack.c.b16 %v513, %v512
    %v532 = vpack.c.b16 %v515, %v514
    %v533 = vpack.c.b16 %v517, %v516
    %550 = vmatprep.subr.bf16.mxu0 0
    %551 = vmatpush1.bf16.msra.mxu0 %v518
    %552 = vmatprep.subr.bf16.mxu0 0
    %553 = vmatpush1.bf16.msra.mxu0 %v519
    %554 = vmatprep.subr.bf16.mxu0 0
    %555 = vmatpush1.bf16.msra.mxu0 %v520
    %556 = vmatprep.subr.bf16.mxu0 0
    %557 = vmatpush1.bf16.msra.mxu0 %v521
    %558 = vmatprep.subr.bf16.mxu0 0
    %559 = vmatpush1.bf16.msra.mxu0 %v522
    %560 = vmatprep.subr.bf16.mxu0 0
    %561 = vmatpush1.bf16.msra.mxu0 %v523
    %562 = vmatprep.subr.bf16.mxu0 0
    %563 = vmatpush1.bf16.msra.mxu0 %v524
    %564 = vmatprep.subr.bf16.mxu0 0
    %565 = vmatpush1.bf16.msra.mxu0 %v525
    %566 = vmatprep.subr.bf16.mxu0 0
    %567 = vmatpush1.bf16.msra.mxu0 %v526
    %568 = vmatprep.subr.bf16.mxu0 0
    %569 = vmatpush1.bf16.msra.mxu0 %v527
    %570 = vmatprep.subr.bf16.mxu0 0
    %571 = vmatpush1.bf16.msra.mxu0 %v528
    %572 = vmatprep.subr.bf16.mxu0 0
    %573 = vmatpush1.bf16.msra.mxu0 %v529
    %574 = vmatprep.subr.bf16.mxu0 0
    %575 = vmatpush1.bf16.msra.mxu0 %v530
    %576 = vmatprep.subr.bf16.mxu0 0
    %577 = vmatpush1.bf16.msra.mxu0 %v531
    %578 = vmatprep.subr.bf16.mxu0 0
    %579 = vmatpush1.bf16.msra.mxu0 %v532
    %580 = vmatprep.subr.bf16.mxu0 0
    %581 = vmatpush1.bf16.msra.mxu0 %v533
    %582 = vmatprep.mubr.bf16.mxu0 %v414
    %583 = vmatmul.mubr.bf16.gmra.mrb[0].mxu0 %v413
    %v584 = vpop.f32.mrb[0].mxu0
    %v585 = vadd.f32 %v452, %v584
    %v586 = vpop.f32.mrb[0].mxu0
    %v587 = vpop.f32.mrb[0].mxu0
    %v588 = vpop.f32.mrb[0].mxu0
    %589 = vdwg.mxu0
    %590 = vst [vmem:[%s9] sm:$0xff] %v585
    // Predicated region
    $region54: #{actor_critic_forward.1} parent=1 // pred_check
      _
    $region55: #{actor_critic_forward.1} parent=1 // pred_check_branch
      %592 = sbr.rel (0) target = $region57
    $region56: #{actor_critic_forward.1} parent=1 // pred_region
      _
    $region57: #{actor_critic_forward.1} parent=1 // pred_fallthru
      _
    // Predicated region
    $region58: #{actor_critic_forward.1} parent=1 // pred_check
      _
    $region59: #{actor_critic_forward.1} parent=1 // pred_check_branch
      %594 = sbr.rel (0) target = $region61
    $region60: #{actor_critic_forward.1} parent=1 // pred_region
      _
    $region61: #{actor_critic_forward.1} parent=1 // pred_fallthru
      _
    %595 = vsyncpa [#allocation3], 1
    %596 = vsyncpa [#allocation5], 1
    %597 = vsyncpa [#allocation8], 1

</llo_original>
